<compile_context>
chip_gen: v5e
topology: v5e:2x2
jax: 0.10.0
libtpu: 0.0.40
codegen_flags: <defaults>
</compile_context>

<pallas_src>
import jax
import jax.numpy as jnp
import numpy as np
from jax.experimental import pallas as pl
from jax.experimental.pallas import tpu as pltpu

B = 2    # batch
L = 14   # input length implied by fc1: pool out = 7  ->  conv out = 14


def smallcnn_kernel(cw_ref, slab_ref, x_ref, out_ref):
    # cw_ref : (8,)    SMEM  [w00, w01, w02, cb0, w10, w11, w12, cb1]
    # slab_ref: (8, 28) VMEM  rows 0-3: expanded fc1 weight (4, 28)
    #                          row  4 : b1 in lanes 0..3
    #                          rows 5-6: W2 (2, 4) in lanes 0..3
    #                          row  7 : b2 in lanes 0..1
    # x_ref  : (B, L)  VMEM  input (channel dim already squeezed)
    # out_ref: (B, 2)  VMEM  softmax probabilities

    # ---- hoist all conv scalars once (no redundant SMEM reads / broadcasts) ----
    w00 = cw_ref[0]; w01 = cw_ref[1]; w02 = cw_ref[2]; cb0 = cw_ref[3]
    w10 = cw_ref[4]; w11 = cw_ref[5]; w12 = cw_ref[6]; cb1 = cw_ref[7]

    x = x_ref[...]                                     # (B, L) f32
    Bn = x.shape[0]
    pad1 = jnp.zeros((Bn, 1), jnp.float32)
    pad2 = jnp.zeros((Bn, 2), jnp.float32)

    # Shifted views of the zero-padded signal xpad = [0, x, 0, 0], built
    # in-register (replaces the wrapper-side jnp.pad + extra HBM round trip).
    s0 = jnp.concatenate([pad1, x[:, :L - 1]], axis=1)   # xpad[0 : L]
    s1 = x                                               # xpad[1 : L+1]
    s2 = jnp.concatenate([x[:, 1:], pad1], axis=1)       # xpad[2 : L+2]
    s3 = jnp.concatenate([x[:, 2:], pad2], axis=1)       # xpad[3 : L+3]

    # Conv (stride 1, padding 1) evaluated at positions t and t+1, with ReLU and
    # MaxPool(2,2) fused (max and relu commute).  Valid pooled values land on
    # even lanes t = 0,2,...,12; odd-lane garbage (incl. the out-of-range
    # conv[14] term) is nulled by the exactly-zero odd columns of the expanded
    # fc1 weight.
    a0 = w00 * s0 + w01 * s1 + w02 * s2 + cb0
    c0 = w00 * s1 + w01 * s2 + w02 * s3 + cb0
    p0 = jnp.maximum(jnp.maximum(a0, c0), 0.0)           # (B, L) channel 0
    a1 = w10 * s0 + w11 * s1 + w12 * s2 + cb1
    c1 = w10 * s1 + w11 * s2 + w12 * s3 + cb1
    p1 = jnp.maximum(jnp.maximum(a1, c1), 0.0)           # (B, L) channel 1

    pcat = jnp.concatenate([p0, p1], axis=1)             # (B, 2L) = (B, 28)

    slab = slab_ref[...]                                 # (8, 28)
    w1e = slab[0:4, :]                                   # (4, 28) fused fc1 weight
    b1r = slab[4:5, 0:4]                                 # (1, 4)
    w2 = slab[5:7, 0:4]                                  # (2, 4)
    b2a = slab[7:8, 0:1]                                 # (1, 1)
    b2b = slab[7:8, 1:2]                                 # (1, 1)

    # fc1 on the VPU: 4 broadcast-multiplies + 4 lane reductions (no MXU
    # push/pop round trip at these shapes).
    z1 = jnp.concatenate(
        [jnp.sum(pcat * w1e[j:j + 1, :], axis=1, keepdims=True) for j in range(4)],
        axis=1) + b1r                                    # (B, 4)
    h = jnp.maximum(z1, 0.0)

    # fc2 (2 outputs) on the VPU.
    za = jnp.sum(h * w2[0:1, :], axis=1, keepdims=True) + b2a   # (B, 1)
    zb = jnp.sum(h * w2[1:2, :], axis=1, keepdims=True) + b2b   # (B, 1)

    # 2-class softmax without cross-lane reductions: exp on the EUP slot,
    # single divide, numerically stable (max-subtracted).
    m = jnp.maximum(za, zb)
    ea = jnp.exp(za - m)
    eb = jnp.exp(zb - m)
    inv = 1.0 / (ea + eb)
    out_ref[...] = jnp.concatenate([ea * inv, eb * inv], axis=1)   # (B, 2)


def pack_params(Wc, bc, W1, b1, W2, b2):
    """One-time host-side (numpy) packing of all parameters into 2 operands.

    Returns:
      conv_flat: (8,)   f32  [w00, w01, w02, b0, w10, w11, w12, b1] for SMEM
      slab:      (8,28) f32  packed fc1/fc2 parameters for VMEM
    """
    Wc = np.asarray(Wc, np.float32); bc = np.asarray(bc, np.float32)
    W1 = np.asarray(W1, np.float32); b1 = np.asarray(b1, np.float32)
    W2 = np.asarray(W2, np.float32); b2 = np.asarray(b2, np.float32)

    conv_flat = np.concatenate(
        [Wc[0, 0, :], bc[0:1], Wc[1, 0, :], bc[1:2]]).astype(np.float32)

    # Expanded fc1 weight folding the channel-major flatten + even-lane pooling
    # selection:  W1e[j, 14*c + 2*u] = W1[j, 7*c + u];  odd columns stay exactly
    # zero (correctness invariant: they mask dead odd-lane conv values).
    W1e = np.zeros((4, 2 * L), np.float32)
    W1e[:, 0:L:2] = W1[:, 0:7]
    W1e[:, L:2 * L:2] = W1[:, 7:14]

    slab = np.zeros((8, 2 * L), np.float32)
    slab[0:4, :] = W1e
    slab[4, 0:4] = b1
    slab[5:7, 0:4] = W2
    slab[7, 0:2] = b2
    return jnp.asarray(conv_flat), jnp.asarray(slab)


def smallcnn_forward(x, conv_flat, slab):
    """x: (B, 1, L) float32; conv_flat/slab: pre-packed params from pack_params."""
    Bn = x.shape[0]
    xs = x.reshape(Bn, L)                      # in_channels == 1; free reshape
    smem = pl.BlockSpec(memory_space=pltpu.MemorySpace.SMEM)
    vmem = pl.BlockSpec(memory_space=pltpu.MemorySpace.VMEM)
    return pl.pallas_call(
        smallcnn_kernel,
        out_shape=jax.ShapeDtypeStruct((Bn, 2), jnp.float32),
        in_specs=[smem, vmem, vmem],
        out_specs=vmem,
    )(conv_flat, slab, xs)


def ref_forward(x, Wc, bc, W1, b1, W2, b2):
    """Plain-JAX reference mirroring the PyTorch forward."""
    xpad = jnp.pad(x, ((0, 0), (0, 0), (1, 1)))                       # (B,1,L+2)
    conv = jnp.stack(
        [sum(Wc[c, 0, k] * xpad[:, 0, k:k + L] for k in range(3)) + bc[c]
         for c in range(2)],
        axis=1)                                                        # (B,2,L)
    r = jnp.maximum(conv, 0.0)
    pooled = jnp.maximum(r[:, :, 0::2], r[:, :, 1::2])                 # (B,2,7)
    flat = pooled.reshape(x.shape[0], 2 * 7)
    h = jnp.maximum(flat @ W1.T + b1, 0.0)
    z = h @ W2.T + b2
    return jax.nn.softmax(z, axis=1)


if __name__ == "__main__":
    key = jax.random.PRNGKey(0)
    kx, k1, k2, k3, k4, k5, k6 = jax.random.split(key, 7)

    x = jax.random.normal(kx, (B, 1, L), dtype=jnp.float32)

    # deterministic synthetic parameters (same shapes as the nn.Module)
    Wc = 0.3 * jax.random.normal(k1, (2, 1, 3), dtype=jnp.float32)     # conv1.weight
    bc = 0.1 * jax.random.normal(k2, (2,), dtype=jnp.float32)          # conv1.bias
    W1 = 0.2 * jax.random.normal(k3, (4, 2 * 7), dtype=jnp.float32)    # fc1.weight
    b1 = 0.1 * jax.random.normal(k4, (4,), dtype=jnp.float32)          # fc1.bias
    W2 = 0.2 * jax.random.normal(k5, (2, 4), dtype=jnp.float32)        # fc2.weight
    b2 = 0.1 * jax.random.normal(k6, (2,), dtype=jnp.float32)          # fc2.bias

    # One-time packing (numpy on host) -> 2 parameter operands.
    conv_flat, slab = pack_params(Wc, bc, W1, b1, W2, b2)

    fwd = jax.jit(smallcnn_forward)
    out = jax.block_until_ready(fwd(x, conv_flat, slab))

    ref = jax.block_until_ready(ref_forward(x, Wc, bc, W1, b1, W2, b2))
    np.testing.assert_allclose(np.asarray(out), np.asarray(ref), rtol=1e-4, atol=1e-5)

    print("KERNEL_OK")
</pallas_src>

<mosaic_0001>
module attributes {stable_mosaic.version = 11 : i64} {
  func.func @smallcnn_kernel(%arg0: memref<8xf32, #tpu.memory_space<smem>>, %arg1: memref<8x28xf32, #tpu.memory_space<vmem>>, %arg2: memref<2x14xf32, #tpu.memory_space<vmem>>, %arg3: memref<2x2xf32, #tpu.memory_space<vmem>>) attributes {dimension_semantics = [], scalar_prefetch = 0 : i64, scratch_operands = 0 : i64, tpu.core_type = #tpu.core_type<tc>} {
    %c0 = arith.constant 0 : index
    %0 = memref.load %arg0[%c0] : memref<8xf32, #tpu.memory_space<smem>>
    %c1 = arith.constant 1 : index
    %1 = memref.load %arg0[%c1] : memref<8xf32, #tpu.memory_space<smem>>
    %c2 = arith.constant 2 : index
    %2 = memref.load %arg0[%c2] : memref<8xf32, #tpu.memory_space<smem>>
    %c3 = arith.constant 3 : index
    %3 = memref.load %arg0[%c3] : memref<8xf32, #tpu.memory_space<smem>>
    %c4 = arith.constant 4 : index
    %4 = memref.load %arg0[%c4] : memref<8xf32, #tpu.memory_space<smem>>
    %c5 = arith.constant 5 : index
    %5 = memref.load %arg0[%c5] : memref<8xf32, #tpu.memory_space<smem>>
    %c6 = arith.constant 6 : index
    %6 = memref.load %arg0[%c6] : memref<8xf32, #tpu.memory_space<smem>>
    %c7 = arith.constant 7 : index
    %7 = memref.load %arg0[%c7] : memref<8xf32, #tpu.memory_space<smem>>
    %c0_0 = arith.constant 0 : index
    %c0_1 = arith.constant 0 : index
    %8 = vector.load %arg2[%c0_0, %c0_1] : memref<2x14xf32, #tpu.memory_space<vmem>>, vector<2x14xf32>
    %cst = arith.constant 0.000000e+00 : f32
    %9 = vector.broadcast %cst : f32 to vector<2x1xf32>
    %cst_2 = arith.constant 0.000000e+00 : f32
    %10 = vector.broadcast %cst_2 : f32 to vector<2x2xf32>
    %11 = vector.extract_strided_slice %8 {offsets = [0, 0], sizes = [2, 13], strides = [1, 1]} : vector<2x14xf32> to vector<2x13xf32>
    %12 = tpu.concatenate %9, %11 in 1 : vector<2x1xf32>, vector<2x13xf32> -> vector<2x14xf32>
    %13 = vector.extract_strided_slice %8 {offsets = [0, 1], sizes = [2, 13], strides = [1, 1]} : vector<2x14xf32> to vector<2x13xf32>
    %14 = tpu.concatenate %13, %9 in 1 : vector<2x13xf32>, vector<2x1xf32> -> vector<2x14xf32>
    %15 = vector.extract_strided_slice %8 {offsets = [0, 2], sizes = [2, 12], strides = [1, 1]} : vector<2x14xf32> to vector<2x12xf32>
    %16 = tpu.concatenate %15, %10 in 1 : vector<2x12xf32>, vector<2x2xf32> -> vector<2x14xf32>
    %17 = vector.broadcast %0 : f32 to vector<2x14xf32>
    %18 = arith.mulf %17, %12 : vector<2x14xf32>
    %19 = vector.broadcast %1 : f32 to vector<2x14xf32>
    %20 = arith.mulf %19, %8 : vector<2x14xf32>
    %21 = arith.addf %18, %20 : vector<2x14xf32>
    %22 = vector.broadcast %2 : f32 to vector<2x14xf32>
    %23 = arith.mulf %22, %14 : vector<2x14xf32>
    %24 = arith.addf %21, %23 : vector<2x14xf32>
    %25 = vector.broadcast %3 : f32 to vector<2x14xf32>
    %26 = arith.addf %24, %25 : vector<2x14xf32>
    %27 = vector.broadcast %0 : f32 to vector<2x14xf32>
    %28 = arith.mulf %27, %8 : vector<2x14xf32>
    %29 = vector.broadcast %1 : f32 to vector<2x14xf32>
    %30 = arith.mulf %29, %14 : vector<2x14xf32>
    %31 = arith.addf %28, %30 : vector<2x14xf32>
    %32 = vector.broadcast %2 : f32 to vector<2x14xf32>
    %33 = arith.mulf %32, %16 : vector<2x14xf32>
    %34 = arith.addf %31, %33 : vector<2x14xf32>
    %35 = vector.broadcast %3 : f32 to vector<2x14xf32>
    %36 = arith.addf %34, %35 : vector<2x14xf32>
    %37 = arith.maximumf %26, %36 : vector<2x14xf32>
    %cst_3 = arith.constant 0.000000e+00 : f32
    %38 = vector.broadcast %cst_3 : f32 to vector<2x14xf32>
    %39 = arith.maximumf %37, %38 : vector<2x14xf32>
    %40 = vector.broadcast %4 : f32 to vector<2x14xf32>
    %41 = arith.mulf %40, %12 : vector<2x14xf32>
    %42 = vector.broadcast %5 : f32 to vector<2x14xf32>
    %43 = arith.mulf %42, %8 : vector<2x14xf32>
    %44 = arith.addf %41, %43 : vector<2x14xf32>
    %45 = vector.broadcast %6 : f32 to vector<2x14xf32>
    %46 = arith.mulf %45, %14 : vector<2x14xf32>
    %47 = arith.addf %44, %46 : vector<2x14xf32>
    %48 = vector.broadcast %7 : f32 to vector<2x14xf32>
    %49 = arith.addf %47, %48 : vector<2x14xf32>
    %50 = vector.broadcast %4 : f32 to vector<2x14xf32>
    %51 = arith.mulf %50, %8 : vector<2x14xf32>
    %52 = vector.broadcast %5 : f32 to vector<2x14xf32>
    %53 = arith.mulf %52, %14 : vector<2x14xf32>
    %54 = arith.addf %51, %53 : vector<2x14xf32>
    %55 = vector.broadcast %6 : f32 to vector<2x14xf32>
    %56 = arith.mulf %55, %16 : vector<2x14xf32>
    %57 = arith.addf %54, %56 : vector<2x14xf32>
    %58 = vector.broadcast %7 : f32 to vector<2x14xf32>
    %59 = arith.addf %57, %58 : vector<2x14xf32>
    %60 = arith.maximumf %49, %59 : vector<2x14xf32>
    %cst_4 = arith.constant 0.000000e+00 : f32
    %61 = vector.broadcast %cst_4 : f32 to vector<2x14xf32>
    %62 = arith.maximumf %60, %61 : vector<2x14xf32>
    %63 = tpu.concatenate %39, %62 in 1 : vector<2x14xf32>, vector<2x14xf32> -> vector<2x28xf32>
    %c0_5 = arith.constant 0 : index
    %c0_6 = arith.constant 0 : index
    %64 = vector.load %arg1[%c0_5, %c0_6] : memref<8x28xf32, #tpu.memory_space<vmem>>, vector<8x28xf32>
    %65 = vector.extract_strided_slice %64 {offsets = [0, 0], sizes = [4, 28], strides = [1, 1]} : vector<8x28xf32> to vector<4x28xf32>
    %66 = vector.extract_strided_slice %64 {offsets = [4, 0], sizes = [1, 4], strides = [1, 1]} : vector<8x28xf32> to vector<1x4xf32>
    %67 = vector.extract_strided_slice %64 {offsets = [5, 0], sizes = [2, 4], strides = [1, 1]} : vector<8x28xf32> to vector<2x4xf32>
    %68 = vector.extract_strided_slice %64 {offsets = [7, 0], sizes = [1, 1], strides = [1, 1]} : vector<8x28xf32> to vector<1x1xf32>
    %69 = vector.extract_strided_slice %64 {offsets = [7, 1], sizes = [1, 1], strides = [1, 1]} : vector<8x28xf32> to vector<1x1xf32>
    %70 = vector.extract_strided_slice %65 {offsets = [0, 0], sizes = [1, 28], strides = [1, 1]} : vector<4x28xf32> to vector<1x28xf32>
    %71 = vector.broadcast %70 : vector<1x28xf32> to vector<2x28xf32>
    %72 = arith.mulf %63, %71 : vector<2x28xf32>
    %cst_7 = arith.constant dense<0.000000e+00> : vector<2xf32>
    %73 = vector.multi_reduction <add>, %72, %cst_7 [1] : vector<2x28xf32> to vector<2xf32>
    %74 = vector.shape_cast %73 : vector<2xf32> to vector<2x1xf32>
    %75 = vector.extract_strided_slice %65 {offsets = [1, 0], sizes = [1, 28], strides = [1, 1]} : vector<4x28xf32> to vector<1x28xf32>
    %76 = vector.broadcast %75 : vector<1x28xf32> to vector<2x28xf32>
    %77 = arith.mulf %63, %76 : vector<2x28xf32>
    %cst_8 = arith.constant dense<0.000000e+00> : vector<2xf32>
    %78 = vector.multi_reduction <add>, %77, %cst_8 [1] : vector<2x28xf32> to vector<2xf32>
    %79 = vector.shape_cast %78 : vector<2xf32> to vector<2x1xf32>
    %80 = vector.extract_strided_slice %65 {offsets = [2, 0], sizes = [1, 28], strides = [1, 1]} : vector<4x28xf32> to vector<1x28xf32>
    %81 = vector.broadcast %80 : vector<1x28xf32> to vector<2x28xf32>
    %82 = arith.mulf %63, %81 : vector<2x28xf32>
    %cst_9 = arith.constant dense<0.000000e+00> : vector<2xf32>
    %83 = vector.multi_reduction <add>, %82, %cst_9 [1] : vector<2x28xf32> to vector<2xf32>
    %84 = vector.shape_cast %83 : vector<2xf32> to vector<2x1xf32>
    %85 = vector.extract_strided_slice %65 {offsets = [3, 0], sizes = [1, 28], strides = [1, 1]} : vector<4x28xf32> to vector<1x28xf32>
    %86 = vector.broadcast %85 : vector<1x28xf32> to vector<2x28xf32>
    %87 = arith.mulf %63, %86 : vector<2x28xf32>
    %cst_10 = arith.constant dense<0.000000e+00> : vector<2xf32>
    %88 = vector.multi_reduction <add>, %87, %cst_10 [1] : vector<2x28xf32> to vector<2xf32>
    %89 = vector.shape_cast %88 : vector<2xf32> to vector<2x1xf32>
    %90 = tpu.concatenate %74, %79, %84, %89 in 1 : vector<2x1xf32>, vector<2x1xf32>, vector<2x1xf32>, vector<2x1xf32> -> vector<2x4xf32>
    %91 = vector.broadcast %66 : vector<1x4xf32> to vector<2x4xf32>
    %92 = arith.addf %90, %91 : vector<2x4xf32>
    %cst_11 = arith.constant 0.000000e+00 : f32
    %93 = vector.broadcast %cst_11 : f32 to vector<2x4xf32>
    %94 = arith.maximumf %92, %93 : vector<2x4xf32>
    %95 = vector.extract_strided_slice %67 {offsets = [0, 0], sizes = [1, 4], strides = [1, 1]} : vector<2x4xf32> to vector<1x4xf32>
    %96 = vector.broadcast %95 : vector<1x4xf32> to vector<2x4xf32>
    %97 = arith.mulf %94, %96 : vector<2x4xf32>
    %cst_12 = arith.constant dense<0.000000e+00> : vector<2xf32>
    %98 = vector.multi_reduction <add>, %97, %cst_12 [1] : vector<2x4xf32> to vector<2xf32>
    %99 = vector.shape_cast %98 : vector<2xf32> to vector<2x1xf32>
    %100 = vector.broadcast %68 : vector<1x1xf32> to vector<2x1xf32>
    %101 = arith.addf %99, %100 : vector<2x1xf32>
    %102 = vector.extract_strided_slice %67 {offsets = [1, 0], sizes = [1, 4], strides = [1, 1]} : vector<2x4xf32> to vector<1x4xf32>
    %103 = vector.broadcast %102 : vector<1x4xf32> to vector<2x4xf32>
    %104 = arith.mulf %94, %103 : vector<2x4xf32>
    %cst_13 = arith.constant dense<0.000000e+00> : vector<2xf32>
    %105 = vector.multi_reduction <add>, %104, %cst_13 [1] : vector<2x4xf32> to vector<2xf32>
    %106 = vector.shape_cast %105 : vector<2xf32> to vector<2x1xf32>
    %107 = vector.broadcast %69 : vector<1x1xf32> to vector<2x1xf32>
    %108 = arith.addf %106, %107 : vector<2x1xf32>
    %109 = arith.maximumf %101, %108 : vector<2x1xf32>
    %110 = arith.subf %101, %109 : vector<2x1xf32>
    %111 = math.exp %110 : vector<2x1xf32>
    %112 = arith.subf %108, %109 : vector<2x1xf32>
    %113 = math.exp %112 : vector<2x1xf32>
    %114 = arith.addf %111, %113 : vector<2x1xf32>
    %cst_14 = arith.constant 1.000000e+00 : f32
    %115 = vector.broadcast %cst_14 : f32 to vector<2x1xf32>
    %116 = arith.divf %115, %114 : vector<2x1xf32>
    %117 = arith.mulf %111, %116 : vector<2x1xf32>
    %118 = arith.mulf %113, %116 : vector<2x1xf32>
    %119 = tpu.concatenate %117, %118 in 1 : vector<2x1xf32>, vector<2x1xf32> -> vector<2x2xf32>
    %c0_15 = arith.constant 0 : index
    %c0_16 = arith.constant 0 : index
    %120 = vector.load %arg3[%c0_15, %c0_16] : memref<2x2xf32, #tpu.memory_space<vmem>>, vector<2x2xf32>
    tpu.vector_store %arg3[%c0_15, %c0_16], %119 {strides = array<i32>} : memref<2x2xf32, #tpu.memory_space<vmem>>, vector<2x2xf32>,
    return
  }
}

</mosaic_0001>

<llo_original>
// kernel: smallcnn_forward.1
$region0: #{smallcnn_forward.1}
  #allocation0 [shape = 'u32[]', space=smem, size = 0x4, offset = 0x4, fixed_abs, tag = 'smem constant byte address 0x4 - core index']
  #allocation1 [shape = 'u32[72,128]{1,0:T(1,128)}', space=vmem, size = 0x9000, scoped, tag = 'internal scratch']
  %s0 = inlined_call_operand.vmem [shape: f32[8], index: 0, kind: input, shape index: {}]
  %s1 = inlined_call_operand.hbm [shape: f32[8,28], index: 1, kind: input, shape index: {}]
  %s2 = inlined_call_operand.hbm [shape: f32[2,14], index: 2, kind: input, shape index: {}]
  %s3 = inlined_call_operand.hbm [shape: f32[2,2], index: 3, kind: output, shape index: {}]
  %s4 = sld [smem:[#allocation0]]
  $region34: #{smallcnn_forward.1} parent=0
    _
  %s6 = ssub.s32 1, %s4
  %s7 = scalar_select 0, %s6, %s4
  $region1: #{smallcnn_forward.1} parent=0
    #allocation2 [shape = 'u8[512]{0}', space=smem, size = 0x200, scoped, tag = 'input window, operand 0, single buffered']
    #allocation3 [shape = 's32[1]{0}', space=sflag, size = 0x4, scoped, tag = 'scoped memory for smallcnn_forward.1']
    #allocation4 [shape = 's32[1]{0}', space=sflag, size = 0x4, scoped, tag = 'scoped memory for smallcnn_forward.1']
    #allocation5 [shape = 's32[1]{0}', space=sflag, size = 0x4, scoped, tag = 'scoped memory for smallcnn_forward.1']
    #allocation6 [shape = 'u8[4096]{0}', space=vmem, size = 0x1000, scoped, tag = 'input window, operand 1, single buffered']
    #allocation7 [shape = 'u8[1024]{0}', space=vmem, size = 0x400, scoped, tag = 'input window, operand 2, single buffered']
    #allocation8 [shape = 's32[1]{0}', space=sflag, size = 0x4, scoped, tag = 'scoped memory for smallcnn_forward.1']
    #allocation9 [shape = 'u8[1024]{0}', space=vmem, size = 0x400, scoped, tag = 'output window, operand 0, single buffered']
    %8 = vsyncpa [#allocation5], 0
    %9 = vsyncpa [#allocation3], 0
    %10 = vsyncpa [#allocation8], 0
    %11 = vsyncpa [#allocation4], 0
    // Predicated region
    $region2: #{smallcnn_forward.1} parent=1 // pred_check
      _
    $region3: #{smallcnn_forward.1} parent=1 // pred_check_branch
      %13 = sbr.rel (0) target = $region5
    $region4: #{smallcnn_forward.1} parent=1 // pred_region
      %15 = vsyncadd [#allocation5], 0
      %s17 = sshll.u32 %s0, 4
      %s18 = int_to_ptr.vmem [resolvable:$true] %s17
      %20 = dma.vmem_to_smem %s18, 16, [#allocation2], [#allocation5]
    $region5: #{smallcnn_forward.1} parent=1 // pred_fallthru
      _
    // Predicated region
    $region6: #{smallcnn_forward.1} parent=1 // pred_check
      _
    $region7: #{smallcnn_forward.1} parent=1 // pred_check_branch
      %22 = sbr.rel (0) target = $region9
    $region8: #{smallcnn_forward.1} parent=1 // pred_region
      %24 = vsyncadd [#allocation3], 0
      %s26 = sshll.u32 %s1, 4
      %s27 = int_to_ptr.hbm [resolvable:$true] %s26
      %s28 = sshll.u32 [#allocation6], 4
      %s29 = int_to_ptr.vmem [resolvable:$true] %s28
      %31 = dma.hbm_to_vmem [thread:$0]  %s27, 128, %s29, [#allocation3]
    $region9: #{smallcnn_forward.1} parent=1 // pred_fallthru
      _
    // Predicated region
    $region10: #{smallcnn_forward.1} parent=1 // pred_check
      _
    $region11: #{smallcnn_forward.1} parent=1 // pred_check_branch
      %33 = sbr.rel (0) target = $region13
    $region12: #{smallcnn_forward.1} parent=1 // pred_region
      %35 = vsyncadd [#allocation8], 0
      %s37 = sshll.u32 %s2, 4
      %s38 = int_to_ptr.hbm [resolvable:$true] %s37
      %s39 = sshll.u32 [#allocation7], 4
      %s40 = int_to_ptr.vmem [resolvable:$true] %s39
      %42 = dma.hbm_to_vmem [thread:$0]  %s38, 32, %s40, [#allocation8]
    $region13: #{smallcnn_forward.1} parent=1 // pred_fallthru
      _
    // Predicated region
    $region14: #{smallcnn_forward.1} parent=1 // pred_check
      _
    $region15: #{smallcnn_forward.1} parent=1 // pred_check_branch
      %44 = sbr.rel (0) target = $region17
    $region16: #{smallcnn_forward.1} parent=1 // pred_region
      %46 = dma.done [#allocation5], 16
    $region17: #{smallcnn_forward.1} parent=1 // pred_fallthru
      _
    // Predicated region
    $region18: #{smallcnn_forward.1} parent=1 // pred_check
      _
    $region19: #{smallcnn_forward.1} parent=1 // pred_check_branch
      %48 = sbr.rel (0) target = $region21
    $region20: #{smallcnn_forward.1} parent=1 // pred_region
      %50 = dma.done [#allocation3], 128
    $region21: #{smallcnn_forward.1} parent=1 // pred_fallthru
      _
    // Predicated region
    $region22: #{smallcnn_forward.1} parent=1 // pred_check
      _
    $region23: #{smallcnn_forward.1} parent=1 // pred_check_branch
      %52 = sbr.rel (0) target = $region25
    $region24: #{smallcnn_forward.1} parent=1 // pred_region
      %54 = dma.done [#allocation8], 32
    $region25: #{smallcnn_forward.1} parent=1 // pred_fallthru
      _
    %55 = sfence
    %s56 = sld [smem:[#allocation2]]
    %s57 = sld [smem:[#allocation2 + $0x1]]
    %s58 = sld [smem:[#allocation2 + $0x2]]
    %s59 = sld [smem:[#allocation2 + $0x3]]
    %s60 = sld [smem:[#allocation2 + $0x4]]
    %s61 = sld [smem:[#allocation2 + $0x5]]
    %s62 = sld [smem:[#allocation2 + $0x6]]
    %s63 = sld [smem:[#allocation2 + $0x7]]
    %v64 = vld [vmem:[#allocation7] sm:$0x3]
    %66 = vrot.lane.b32.xlu0 %v64, 1
    %v67 = vpop.permute.xlu0 %66
    %vm69 = vcmask 7168
    %v70 = vsel %vm69, 0.0, %v67
    %71 = vrot.lane.b32.xlu0 %v64, 127
    %v72 = vpop.permute.xlu0 %71
    %vm74 = vcmask 105472
    %v75 = vsel %vm74, %v72, 0.0
    %76 = vrot.lane.b32.xlu0 %v64, 126
    %v77 = vpop.permute.xlu0 %76
    %vm79 = vcmask 97280
    %v80 = vsel %vm79, %v77, 0.0
    %v81 = vstv %s56
    %v82 = vmul.f32 %v81, %v70
    %v83 = vstv %s57
    %v84 = vmul.f32 %v83, %v64
    %v85 = vadd.f32 %v82, %v84
    %v86 = vstv %s58
    %v87 = vmul.f32 %v86, %v75
    %v88 = vadd.f32 %v85, %v87
    %v89 = vstv %s59
    %v90 = vadd.f32 %v88, %v89
    %v91 = vmul.f32 %v81, %v64
    %v92 = vmul.f32 %v83, %v75
    %v93 = vadd.f32 %v91, %v92
    %v94 = vmul.f32 %v86, %v80
    %v95 = vadd.f32 %v93, %v94
    %v96 = vadd.f32 %v95, %v89
    %v97 = vmax.f32 %v90, %v96
    %v98 = vmax.f32 %v97, 0.0
    %v99 = vstv %s60
    %v100 = vmul.f32 %v99, %v70
    %v101 = vstv %s61
    %v102 = vmul.f32 %v101, %v64
    %v103 = vadd.f32 %v100, %v102
    %v104 = vstv %s62
    %v105 = vmul.f32 %v104, %v75
    %v106 = vadd.f32 %v103, %v105
    %v107 = vstv %s63
    %v108 = vadd.f32 %v106, %v107
    %v109 = vmul.f32 %v99, %v64
    %v110 = vmul.f32 %v101, %v75
    %v111 = vadd.f32 %v109, %v110
    %v112 = vmul.f32 %v104, %v80
    %v113 = vadd.f32 %v111, %v112
    %v114 = vadd.f32 %v113, %v107
    %v115 = vmax.f32 %v108, %v114
    %v116 = vmax.f32 %v115, 0.0
    %118 = vrot.lane.b32.xlu0 %v116, 14
    %v119 = vpop.permute.xlu0 %118
    %vm121 = vcmask 113664
    %v122 = vsel %vm121, %v98, %v119
    %v123 = vld [vmem:[#allocation6] sm:$0xff]
    %v124 = vperm.slane %v123, 0
    %v125 = vmul.f32 %v122, %v124
    %vm126 = vcmask 222208
    %v127 = vsel %vm126, %v125, 0.0
    %128 = vadd.xlane.f32.xlu0 %v127
    %v129 = vpop.xlane.xlu0 %128
    %v130 = vperm.slane %v123, 1
    %v131 = vmul.f32 %v122, %v130
    %v132 = vsel %vm126, %v131, 0.0
    %133 = vadd.xlane.f32.xlu0 %v132
    %v134 = vpop.xlane.xlu0 %133
    %v135 = vperm.slane %v123, 2
    %v136 = vmul.f32 %v122, %v135
    %v137 = vsel %vm126, %v136, 0.0
    %138 = vadd.xlane.f32.xlu0 %v137
    %v139 = vpop.xlane.xlu0 %138
    %v140 = vperm.slane %v123, 3
    %v141 = vmul.f32 %v122, %v140
    %v142 = vsel %vm126, %v141, 0.0
    %143 = vadd.xlane.f32.xlu0 %v142
    %v144 = vpop.xlane.xlu0 %143
    %v145 = vsel %vm69, %v129, %v134
    %vm146 = vcmask 15360
    %v147 = vsel %vm146, %v145, %v139
    %vm148 = vcmask 23552
    %v149 = vsel %vm148, %v147, %v144
    %v150 = vperm.slane %v123, 4
    %v151 = vadd.f32 %v149, %v150
    %v152 = vmax.f32 %v151, 0.0
    %v153 = vperm.slane %v123, 5
    %v154 = vmul.f32 %v152, %v153
    %vm155 = vcmask 25600
    %v156 = vsel %vm155, %v154, 0.0
    %157 = vadd.xlane.f32.xlu0 %v156
    %v158 = vpop.xlane.xlu0 %157
    %v159 = vperm.slane %v123, 7
    %v160 = vadd.f32 %v158, %v159
    %v161 = vperm.slane %v123, 6
    %v162 = vmul.f32 %v152, %v161
    %v163 = vsel %vm155, %v162, 0.0
    %164 = vadd.xlane.f32.xlu0 %v163
    %v165 = vpop.xlane.xlu0 %164
    %v166 = vadd.f32 %v165, %v159
    %168 = vrot.lane.b32.xlu0 %v166, 127
    %v169 = vpop.permute.xlu0 %168
    %v171 = vmax.f32 %v160, %v169
    %v172 = vsub.f32 %v160, %v171
    %v173 = vmul.f32 %v172, 1.442695
    %v174 = vpow.pop %v173
    %176 = vrot.lane.b32.xlu0 %v171, 1
    %v177 = vpop.permute.xlu0 %176
    %v179 = vsub.f32 %v166, %v177
    %v180 = vmul.f32 %v179, 1.442695
    %v181 = vpow.pop %v180
    %183 = vrot.lane.b32.xlu0 %v181, 127
    %v184 = vpop.permute.xlu0 %183
    %v186 = vadd.f32 %v174, %v184
    %v187 = vrcp.pop %v186
    %v188 = vmul.f32 %v186, %v187
    %v189 = vsub.f32 1.0, %v188
    %v190 = vmul.f32 %v187, %v189
    %v191 = vadd.f32 %v187, %v190
    %vm192 = vweird.f32 %v186
    %vm193 = vweird.f32 %v187
    %vm194 = vmor %vm192, %vm193
    %v195 = vsel %vm194, %v187, %v191
    %v196 = vand.u32 2147483647, %v186
    %vm197 = vcmp.eq.f32.partialorder %v196, 8.507059e+37
    %v198 = vand.u32 %v186, 2147483648
    %v199 = vor.u32 1.1754944e-38, %v198
    %v200 = vsel %vm197, %v199, %v195
    %v201 = vmul.f32 1.0, %v200
    %v202 = vmul.f32 %v174, %v201
    %204 = vrot.lane.b32.xlu0 %v201, 1
    %v205 = vpop.permute.xlu0 %204
    %v207 = vmul.f32 %v181, %v205
    %v208 = vsel %vm69, %v202, %v207
    %vm209 = vcmask 9216
    %210 = vst.msk [vmem:[#allocation9] sm:$0x3] %vm209, %v208
    // Predicated region
    $region26: #{smallcnn_forward.1} parent=1 // pred_check
      _
    $region27: #{smallcnn_forward.1} parent=1 // pred_check_branch
      %212 = sbr.rel (0) target = $region29
    $region28: #{smallcnn_forward.1} parent=1 // pred_region
      %214 = vsyncadd [#allocation4], 0
      %s216 = sshll.u32 [#allocation9], 4
      %s217 = int_to_ptr.vmem [resolvable:$true] %s216
      %s218 = sshll.u32 %s3, 4
      %s219 = int_to_ptr.hbm [resolvable:$true] %s218
      %221 = dma.vmem_to_hbm [thread:$0]  %s217, 32, %s219, [#allocation4]
    $region29: #{smallcnn_forward.1} parent=1 // pred_fallthru
      _
    // Predicated region
    $region30: #{smallcnn_forward.1} parent=1 // pred_check
      _
    $region31: #{smallcnn_forward.1} parent=1 // pred_check_branch
      %223 = sbr.rel (0) target = $region33
    $region32: #{smallcnn_forward.1} parent=1 // pred_region
      %225 = dma.done [#allocation4], 32
    $region33: #{smallcnn_forward.1} parent=1 // pred_fallthru
      _
    %226 = vsyncpa [#allocation3], 1
    %227 = vsyncpa [#allocation8], 1
    %228 = vsyncpa [#allocation4], 1
    %229 = vsyncpa [#allocation5], 1

</llo_original>
